<compile_context>
chip_gen: v6e
topology: v6e:2x2x1
jax: 0.10.0
libtpu: 0.0.40
codegen_flags: <defaults>
</compile_context>

<pallas_src>
import jax
import jax.numpy as jnp
from jax.experimental import pallas as pl
from jax.experimental.pallas import tpu as pltpu

N_INPUTS = 8
N_HIDDEN = 512
N_OUTPUTS = 4  # unused by ValueNet (value head has a single output)


def _cdiv(a: int, b: int) -> int:
    return (a + b - 1) // b


def _round_up(n: int, m: int) -> int:
    return ((n + m - 1) // m) * m


def value_net_kernel(x_ref, w1_ref, w2_ref, b2_ref, o_ref):
    # Layer 1 (bias folded into the matmul as an extra K row) on the MXU,
    # then ReLU on the VPU.  Dropout(p=0.6) in eval mode == identity.
    h = jnp.maximum(
        jnp.dot(x_ref[...], w1_ref[...], preferred_element_type=jnp.float32),
        0.0,
    )  # (tb, n_hidden) f32

    # Layer 2 on the MXU: contract the hidden axis of w2 (1, H) against the
    # hidden axis of h (tb, H) -> lane-dense (1, tb) row, no transpose needed.
    out_row = jax.lax.dot_general(
        w2_ref[...],
        h,
        dimension_numbers=(((1,), (1,)), ((), ())),
        preferred_element_type=jnp.float32,
    )  # (1, tb)

    # b2 is a scalar in SMEM; store the lane-dense row.
    o_ref[...] = (out_row + b2_ref[0, 0])[None]  # (1, 1, tb)


def value_net_forward(x, w1, b1, w2, b2, *, block_b: int = 4096):
    """x: (B, n_inputs) f32 -> (B, 1) f32.

    w1: (n_inputs, n_hidden), b1: (1, n_hidden), w2: (1, n_hidden), b2: (1, 1).
    """
    B, n_in = x.shape
    n_hidden = w1.shape[1]

    # Balance the batch across tiles: waste < 8 rows/step, and B > block_b
    # automatically yields >= 2 grid steps (v7x megacore).
    num_tiles = max(1, _cdiv(B, block_b))
    tb = _round_up(_cdiv(B, num_tiles), 8)
    b_padded = tb * num_tiles

    # Fold b1 into w1 (extra K row) and append a ones column to x.
    w1_aug = jnp.concatenate([w1, b1], axis=0)  # (n_in + 1, n_hidden)
    x_aug = jnp.concatenate([x, jnp.ones((B, 1), x.dtype)], axis=1)  # (B, n_in+1)
    if b_padded != B:
        x_aug = jnp.pad(x_aug, ((0, b_padded - B), (0, 0)))

    grid = (num_tiles,)

    out = pl.pallas_call(
        value_net_kernel,
        # Lane-dense output: one (1, tb) row per grid step.
        out_shape=jax.ShapeDtypeStruct((num_tiles, 1, tb), jnp.float32),
        grid=grid,
        in_specs=[
            # Streamed, double-buffered per batch tile.
            pl.BlockSpec((tb, n_in + 1), lambda i: (i, 0)),
            # Weights: constant block index -> resident in VMEM across steps.
            pl.BlockSpec((n_in + 1, n_hidden), lambda i: (0, 0)),
            pl.BlockSpec((1, n_hidden), lambda i: (0, 0)),
            # Scalar bias in SMEM.
            pl.BlockSpec(memory_space=pltpu.MemorySpace.SMEM),
        ],
        out_specs=pl.BlockSpec((1, 1, tb), lambda i: (i, 0, 0)),
        compiler_params=pltpu.CompilerParams(
            # Batch tiles are independent -> shard across TensorCores on v7x.
            dimension_semantics=("parallel",),
            # Explicit scoped-VMEM limit: lifts v5e's 16 MiB default while
            # staying well under v7x's 64 MiB physical VMEM.
            vmem_limit_bytes=48 * 1024 * 1024,
        ),
    )(x_aug, w1_aug, w2, b2)

    # (num_tiles, 1, tb) row-major == batch order; slice padding, restore (B, 1).
    return out.reshape(b_padded)[:B].reshape(B, 1)


def init_params(key, n_inputs=N_INPUTS, n_hidden=N_HIDDEN):
    """Deterministic init mimicking nn.Linear's U(-1/sqrt(fan_in), 1/sqrt(fan_in))."""
    k1, k2, k3, k4 = jax.random.split(key, 4)
    bound1 = 1.0 / jnp.sqrt(jnp.float32(n_inputs))
    bound2 = 1.0 / jnp.sqrt(jnp.float32(n_hidden))
    # w1 stored as (in_features, out_features) — torch weight transposed.
    w1 = jax.random.uniform(k1, (n_inputs, n_hidden), jnp.float32, -bound1, bound1)
    b1 = jax.random.uniform(k2, (1, n_hidden), jnp.float32, -bound1, bound1)
    # w2 stored as a (1, n_hidden) row.
    w2 = jax.random.uniform(k3, (1, n_hidden), jnp.float32, -bound2, bound2)
    b2 = jax.random.uniform(k4, (1, 1), jnp.float32, -bound2, bound2)
    return w1, b1, w2, b2


def _reference(x, w1, b1, w2, b2):
    return jnp.maximum(x @ w1 + b1, 0.0) @ w2.T + b2


if __name__ == "__main__":
    key = jax.random.PRNGKey(0)
    kx, kp, kx2 = jax.random.split(key, 3)

    w1, b1, w2, b2 = init_params(kp)

    # Small RL-style batch (single grid step).
    batch = 8
    x = jax.random.normal(kx, (batch, N_INPUTS), jnp.float32)
    out = jax.block_until_ready(value_net_forward(x, w1, b1, w2, b2))
    ref = _reference(x, w1, b1, w2, b2)
    assert out.shape == (batch, 1)
    assert jnp.allclose(out, ref, atol=1e-5, rtol=1e-5)

    # Larger, non-multiple-of-tile batch to exercise the multi-step grid,
    # tile balancing, padding, and lane-dense output reshape path.
    batch2 = 200
    x2 = jax.random.normal(kx2, (batch2, N_INPUTS), jnp.float32)
    out2 = jax.block_until_ready(
        value_net_forward(x2, w1, b1, w2, b2, block_b=128)
    )
    ref2 = _reference(x2, w1, b1, w2, b2)
    assert out2.shape == (batch2, 1)
    assert jnp.allclose(out2, ref2, atol=1e-5, rtol=1e-5)

    print("KERNEL_OK")
</pallas_src>

<mosaic_0001>
module attributes {stable_mosaic.version = 11 : i64} {
  func.func @value_net_kernel(%arg0: i32, %arg1: memref<8x9xf32, #tpu.memory_space<vmem>>, %arg2: memref<9x512xf32, #tpu.memory_space<vmem>>, %arg3: memref<1x512xf32, #tpu.memory_space<vmem>>, %arg4: memref<1x1xf32, #tpu.memory_space<smem>>, %arg5: memref<1x1x8xf32, #tpu.memory_space<vmem>>) attributes {dimension_semantics = [#tpu.dimension_semantics<parallel>], iteration_bounds = array<i64: 1>, scalar_prefetch = 0 : i64, scratch_operands = 0 : i64, tpu.core_type = #tpu.core_type<tc>, window_params = [{transform_indices = @transform_0, window_bounds = array<i64: 8, 9>}, {pipeline_mode = #tpu.pipeline_mode<synchronous>, transform_indices = @transform_1, window_bounds = array<i64: 9, 512>}, {pipeline_mode = #tpu.pipeline_mode<synchronous>, transform_indices = @transform_2, window_bounds = array<i64: 1, 512>}, {transform_indices = @transform_3, window_bounds = array<i64: 1, 1>}, {transform_indices = @transform_4, window_bounds = array<i64: 1, 1, 8>}]} {
    %c0 = arith.constant 0 : index
    %c0_0 = arith.constant 0 : index
    %0 = vector.load %arg1[%c0, %c0_0] : memref<8x9xf32, #tpu.memory_space<vmem>>, vector<8x9xf32>
    %c0_1 = arith.constant 0 : index
    %c0_2 = arith.constant 0 : index
    %1 = vector.load %arg2[%c0_1, %c0_2] : memref<9x512xf32, #tpu.memory_space<vmem>>, vector<9x512xf32>
    %cst = arith.constant dense<0.000000e+00> : vector<8x512xf32>
    %2 = tpu.matmul %0, %1, %cst {dimension_numbers = #tpu.dot_dimension_numbers<[1], [0], [0], [1], [0, 0, 1, 1], [], []>} : vector<8x9xf32>, vector<9x512xf32>, vector<8x512xf32> -> vector<8x512xf32>
    %cst_3 = arith.constant 0.000000e+00 : f32
    %3 = vector.broadcast %cst_3 : f32 to vector<8x512xf32>
    %4 = arith.maximumf %2, %3 : vector<8x512xf32>
    %c0_4 = arith.constant 0 : index
    %c0_5 = arith.constant 0 : index
    %5 = vector.load %arg3[%c0_4, %c0_5] : memref<1x512xf32, #tpu.memory_space<vmem>>, vector<1x512xf32>
    %cst_6 = arith.constant dense<0.000000e+00> : vector<1x8xf32>
    %6 = tpu.matmul %5, %4, %cst_6 {dimension_numbers = #tpu.dot_dimension_numbers<[1], [1], [0], [0], [0, 0, 1, 0], [], []>} : vector<1x512xf32>, vector<8x512xf32>, vector<1x8xf32> -> vector<1x8xf32>
    %c0_7 = arith.constant 0 : index
    %c0_8 = arith.constant 0 : index
    %7 = memref.load %arg4[%c0_7, %c0_8] : memref<1x1xf32, #tpu.memory_space<smem>>
    %8 = vector.broadcast %7 : f32 to vector<1x8xf32>
    %9 = arith.addf %6, %8 : vector<1x8xf32>
    %10 = vector.shape_cast %9 : vector<1x8xf32> to vector<1x1x8xf32>
    %c0_9 = arith.constant 0 : index
    %c0_10 = arith.constant 0 : index
    %c0_11 = arith.constant 0 : index
    %11 = vector.load %arg5[%c0_9, %c0_10, %c0_11] : memref<1x1x8xf32, #tpu.memory_space<vmem>>, vector<1x1x8xf32>
    tpu.vector_store %arg5[%c0_9, %c0_10, %c0_11], %10 {strides = array<i32>} : memref<1x1x8xf32, #tpu.memory_space<vmem>>, vector<1x1x8xf32>,
    return
  }
  func.func @transform_0(%arg0: i32) -> (i32, i32) {
    %c0_i32 = arith.constant 0 : i32
    %c0_i32_0 = arith.constant 0 : i32
    return %arg0, %c0_i32 : i32, i32
  }
  func.func @transform_1(%arg0: i32) -> (i32, i32) {
    %c0_i32 = arith.constant 0 : i32
    %c0_i32_0 = arith.constant 0 : i32
    %c0_i32_1 = arith.constant 0 : i32
    return %c0_i32, %c0_i32_0 : i32, i32
  }
  func.func @transform_2(%arg0: i32) -> (i32, i32) {
    %c0_i32 = arith.constant 0 : i32
    %c0_i32_0 = arith.constant 0 : i32
    %c0_i32_1 = arith.constant 0 : i32
    return %c0_i32, %c0_i32_0 : i32, i32
  }
  func.func @transform_3(%arg0: i32) -> (i32, i32) {
    %c0_i32 = arith.constant 0 : i32
    %c0_i32_0 = arith.constant 0 : i32
    %c0_i32_1 = arith.constant 0 : i32
    return %c0_i32, %c0_i32_0 : i32, i32
  }
  func.func @transform_4(%arg0: i32) -> (i32, i32, i32) {
    %c0_i32 = arith.constant 0 : i32
    %c0_i32_0 = arith.constant 0 : i32
    %c0_i32_1 = arith.constant 0 : i32
    return %arg0, %c0_i32, %c0_i32_0 : i32, i32, i32
  }
}

</mosaic_0001>

<llo_original>
// kernel: tpu_custom_call.1
$region0: #{tpu_custom_call.1}
  #allocation0 [shape = 'u32[]', space=smem, size = 0x4, offset = 0x4, fixed_abs, tag = 'smem constant byte address 0x4 - core index']
  #allocation1 [shape = 'u32[144,128]{1,0:T(1,128)}', space=vmem, size = 0x12000, scoped, tag = 'internal scratch']
  #allocation2 [shape = 'f32[1,1]{1,0:T(1,128)S(6)}', space=smem, size = 0x200, scoped, tag = 'scoped memory for tpu_custom_call.1']
  %s0 = inlined_call_operand.hbm [shape: f32[8,9], index: 0, kind: input, shape index: {}]
  %s1 = inlined_call_operand.hbm [shape: f32[9,512], index: 1, kind: input, shape index: {}]
  %s2 = inlined_call_operand.vmem [shape: f32[1,512], index: 2, kind: input, shape index: {}]
  %s3 = inlined_call_operand.<no memory space> [shape: f32[1,1], index: 3, kind: input, shape index: {}]
  %s4 = inlined_call_operand.hbm [shape: f32[1,1,8], index: 4, kind: output, shape index: {}]
  %s5 = sld [smem:[#allocation0]]
  $region34: #{tpu_custom_call.1} parent=0
    _
  %s7 = ssub.s32 1, %s5
  %s8 = scalar_select 0, %s7, %s5
  %9 = sst [smem:[#allocation2]] %s3
  $region1: #{tpu_custom_call.1} parent=0
    #allocation3 [shape = 'u8[4096]{0}', space=vmem, size = 0x1000, scoped, tag = 'input window, operand 0, single buffered']
    #allocation4 [shape = 's32[1]{0}', space=sflag, size = 0x4, scoped, tag = 'scoped memory for tpu_custom_call.1']
    #allocation5 [shape = 's32[1]{0}', space=sflag, size = 0x4, scoped, tag = 'scoped memory for tpu_custom_call.1']
    #allocation6 [shape = 'u8[32768]{0}', space=vmem, size = 0x8000, scoped, tag = 'input window, operand 1, single buffered']
    #allocation7 [shape = 's32[1]{0}', space=sflag, size = 0x4, scoped, tag = 'scoped memory for tpu_custom_call.1']
    #allocation8 [shape = 'u8[512]{0}', space=vmem, size = 0x400, scoped, tag = 'output window, operand 0, single buffered']
    %10 = vsyncpa [#allocation4], 0
    %11 = vsyncpa [#allocation7], 0
    %12 = vsyncpa [#allocation5], 0
    // Predicated region
    $region2: #{tpu_custom_call.1} parent=1 // pred_check
      _
    $region3: #{tpu_custom_call.1} parent=1 // pred_check_branch
      %14 = sbr.rel (0) target = $region5
    $region4: #{tpu_custom_call.1} parent=1 // pred_region
      %s16 = ssub.s32 128, 128
      %17 = vsyncadd [#allocation4], %s16
      %s19 = sshll.u32 [#allocation3], 4
      %s20 = int_to_ptr.vmem [resolvable:$true] %s19
      %22 = dma.hbm_to_vmem [thread:$0]  %s0, 128, %s20, [#allocation4]
    $region5: #{tpu_custom_call.1} parent=1 // pred_fallthru
      _
    // Predicated region
    $region6: #{tpu_custom_call.1} parent=1 // pred_check
      _
    $region7: #{tpu_custom_call.1} parent=1 // pred_check_branch
      %24 = sbr.rel (0) target = $region9
    $region8: #{tpu_custom_call.1} parent=1 // pred_region
      %s26 = ssub.s32 1024, 1024
      %27 = vsyncadd [#allocation7], %s26
      %s28 = sshll.u32 [#allocation6], 4
      %s29 = int_to_ptr.vmem [resolvable:$true] %s28
      %34 = dma.hbm_to_vmem [thread:$0]  %s1, 1024, %s29, [#allocation7], 512, 512, 32
    $region9: #{tpu_custom_call.1} parent=1 // pred_fallthru
      _
    // Predicated region
    $region10: #{tpu_custom_call.1} parent=1 // pred_check
      _
    $region11: #{tpu_custom_call.1} parent=1 // pred_check_branch
      %36 = sbr.rel (0) target = $region13
    $region12: #{tpu_custom_call.1} parent=1 // pred_region
      _
    $region13: #{tpu_custom_call.1} parent=1 // pred_fallthru
      _
    // Predicated region
    $region14: #{tpu_custom_call.1} parent=1 // pred_check
      _
    $region15: #{tpu_custom_call.1} parent=1 // pred_check_branch
      %38 = sbr.rel (0) target = $region17
    $region16: #{tpu_custom_call.1} parent=1 // pred_region
      _
    $region17: #{tpu_custom_call.1} parent=1 // pred_fallthru
      _
    // Predicated region
    $region18: #{tpu_custom_call.1} parent=1 // pred_check
      _
    $region19: #{tpu_custom_call.1} parent=1 // pred_check_branch
      %40 = sbr.rel (0) target = $region21
    $region20: #{tpu_custom_call.1} parent=1 // pred_region
      %41 = dma.done [#allocation4], 128
    $region21: #{tpu_custom_call.1} parent=1 // pred_fallthru
      _
    // Predicated region
    $region22: #{tpu_custom_call.1} parent=1 // pred_check
      _
    $region23: #{tpu_custom_call.1} parent=1 // pred_check_branch
      %43 = sbr.rel (0) target = $region25
    $region24: #{tpu_custom_call.1} parent=1 // pred_region
      %44 = dma.done [#allocation7], 1024
    $region25: #{tpu_custom_call.1} parent=1 // pred_fallthru
      _
    %v45 = vld [vmem:[#allocation3] sm:$0xff]
    %v46 = vld [vmem:[#allocation6] sm:$0xff]
    %v47 = vld [vmem:[#allocation6 + $0x8] sm:$0xff]
    %v48 = vld [vmem:[#allocation6 + $0x10] sm:$0xff]
    %v49 = vld [vmem:[#allocation6 + $0x18] sm:$0xff]
    %v50 = vld [vmem:[#allocation6 + $0x20] sm:$0x1]
    %v51 = vld [vmem:[#allocation6 + $0x28] sm:$0x1]
    %v52 = vld [vmem:[#allocation6 + $0x30] sm:$0x1]
    %v53 = vld [vmem:[#allocation6 + $0x38] sm:$0x1]
    %vm54 = vcmask 72704
    %v56 = vsel %vm54, %v45, 0
    %vm58 = vcmask 1040384
    %v60 = vsel %vm58, %v50, 0
    %v63 = vsel %vm58, %v51, 0
    %v66 = vsel %vm58, %v52, 0
    %v69 = vsel %vm58, %v53, 0
    %71 = vmatprep.subr.mxu0 0.0
    %72 = vmatpush1.msra.mxu0 0.0
    %73 = vmatprep.subr.mxu0 0.0
    %74 = vmatpush1.msra.mxu0 0.0
    %75 = vmatprep.subr.mxu0 0.0
    %76 = vmatpush1.msra.mxu0 0.0
    %77 = vmatprep.subr.mxu0 0.0
    %78 = vmatpush1.msra.mxu0 0.0
    %79 = vmatprep.subr.mxu0 0.0
    %80 = vmatpush1.msra.mxu0 0.0
    %81 = vmatprep.subr.mxu0 0.0
    %82 = vmatpush1.msra.mxu0 0.0
    %83 = vmatprep.subr.mxu0 0.0
    %84 = vmatpush1.msra.mxu0 0.0
    %85 = vmatprep.subr.mxu0 0.0
    %86 = vmatpush1.msra.mxu0 0.0
    %87 = vmatprep.subr.mxu0 0.0
    %88 = vmatpush1.msra.mxu0 0.0
    %89 = vmatprep.subr.mxu0 0.0
    %90 = vmatpush1.msra.mxu0 0.0
    %91 = vmatprep.subr.mxu0 0.0
    %92 = vmatpush1.msra.mxu0 0.0
    %93 = vmatprep.subr.mxu0 0.0
    %94 = vmatpush1.msra.mxu0 0.0
    %95 = vmatprep.subr.mxu0 0.0
    %96 = vmatpush1.msra.mxu0 0.0
    %97 = vmatprep.subr.mxu0 0.0
    %98 = vmatpush1.msra.mxu0 0.0
    %99 = vmatprep.subr.mxu0 %v63
    %100 = vmatpush1.msra.mxu0 %v60
    %101 = vmatprep.subr.mxu0 %v47
    %102 = vmatpush1.msra.mxu0 %v46
    %103 = vmatprep.subr.mxu0 0.0
    %104 = vmatpush2.msra.mxu0 0.0
    %105 = vmatprep.subr.mxu0 0.0
    %106 = vmatpush2.msra.mxu0 0.0
    %107 = vmatprep.subr.mxu0 0.0
    %108 = vmatpush2.msra.mxu0 0.0
    %109 = vmatprep.subr.mxu0 0.0
    %110 = vmatpush2.msra.mxu0 0.0
    %111 = vmatprep.subr.mxu0 0.0
    %112 = vmatpush2.msra.mxu0 0.0
    %113 = vmatprep.subr.mxu0 0.0
    %114 = vmatpush2.msra.mxu0 0.0
    %115 = vmatprep.subr.mxu0 0.0
    %116 = vmatpush2.msra.mxu0 0.0
    %117 = vmatprep.subr.mxu0 0.0
    %118 = vmatpush2.msra.mxu0 0.0
    %119 = vmatprep.subr.mxu0 0.0
    %120 = vmatpush2.msra.mxu0 0.0
    %121 = vmatprep.subr.mxu0 0.0
    %122 = vmatpush2.msra.mxu0 0.0
    %123 = vmatprep.subr.mxu0 0.0
    %124 = vmatpush2.msra.mxu0 0.0
    %125 = vmatprep.subr.mxu0 0.0
    %126 = vmatpush2.msra.mxu0 0.0
    %127 = vmatprep.subr.mxu0 0.0
    %128 = vmatpush2.msra.mxu0 0.0
    %129 = vmatprep.subr.mxu0 0.0
    %130 = vmatpush2.msra.mxu0 0.0
    %131 = vmatprep.subr.mxu0 0.0
    %132 = vmatpush2.msra.mxu0 0.0
    %133 = vmatprep.subr.mxu0 0.0
    %134 = vmatpush2.msra.mxu0 0.0
    %135 = vmatprep.mubr.f32.mxu0 0.0
    %136 = vmatmul.mubr.f32.gmra.mxu0 %v56
    %v137 = vpop.f32.mrf.mxu0
    %v138 = vadd.f32 0.0, %v137
    %v139 = vpop.f32.mrf.mxu0
    %v140 = vadd.f32 0.0, %v139
    %141 = vdwg.mxu0
    %142 = vmatprep.subr.mxu0 0.0
    %143 = vmatpush1.msra.mxu0 0.0
    %144 = vmatprep.subr.mxu0 0.0
    %145 = vmatpush1.msra.mxu0 0.0
    %146 = vmatprep.subr.mxu0 0.0
    %147 = vmatpush1.msra.mxu0 0.0
    %148 = vmatprep.subr.mxu0 0.0
    %149 = vmatpush1.msra.mxu0 0.0
    %150 = vmatprep.subr.mxu0 0.0
    %151 = vmatpush1.msra.mxu0 0.0
    %152 = vmatprep.subr.mxu0 0.0
    %153 = vmatpush1.msra.mxu0 0.0
    %154 = vmatprep.subr.mxu0 0.0
    %155 = vmatpush1.msra.mxu0 0.0
    %156 = vmatprep.subr.mxu0 0.0
    %157 = vmatpush1.msra.mxu0 0.0
    %158 = vmatprep.subr.mxu0 0.0
    %159 = vmatpush1.msra.mxu0 0.0
    %160 = vmatprep.subr.mxu0 0.0
    %161 = vmatpush1.msra.mxu0 0.0
    %162 = vmatprep.subr.mxu0 0.0
    %163 = vmatpush1.msra.mxu0 0.0
    %164 = vmatprep.subr.mxu0 0.0
    %165 = vmatpush1.msra.mxu0 0.0
    %166 = vmatprep.subr.mxu0 0.0
    %167 = vmatpush1.msra.mxu0 0.0
    %168 = vmatprep.subr.mxu0 0.0
    %169 = vmatpush1.msra.mxu0 0.0
    %170 = vmatprep.subr.mxu0 %v69
    %171 = vmatpush1.msra.mxu0 %v66
    %172 = vmatprep.subr.mxu0 %v49
    %173 = vmatpush1.msra.mxu0 %v48
    %174 = vmatprep.subr.mxu0 0.0
    %175 = vmatpush2.msra.mxu0 0.0
    %176 = vmatprep.subr.mxu0 0.0
    %177 = vmatpush2.msra.mxu0 0.0
    %178 = vmatprep.subr.mxu0 0.0
    %179 = vmatpush2.msra.mxu0 0.0
    %180 = vmatprep.subr.mxu0 0.0
    %181 = vmatpush2.msra.mxu0 0.0
    %182 = vmatprep.subr.mxu0 0.0
    %183 = vmatpush2.msra.mxu0 0.0
    %184 = vmatprep.subr.mxu0 0.0
    %185 = vmatpush2.msra.mxu0 0.0
    %186 = vmatprep.subr.mxu0 0.0
    %187 = vmatpush2.msra.mxu0 0.0
    %188 = vmatprep.subr.mxu0 0.0
    %189 = vmatpush2.msra.mxu0 0.0
    %190 = vmatprep.subr.mxu0 0.0
    %191 = vmatpush2.msra.mxu0 0.0
    %192 = vmatprep.subr.mxu0 0.0
    %193 = vmatpush2.msra.mxu0 0.0
    %194 = vmatprep.subr.mxu0 0.0
    %195 = vmatpush2.msra.mxu0 0.0
    %196 = vmatprep.subr.mxu0 0.0
    %197 = vmatpush2.msra.mxu0 0.0
    %198 = vmatprep.subr.mxu0 0.0
    %199 = vmatpush2.msra.mxu0 0.0
    %200 = vmatprep.subr.mxu0 0.0
    %201 = vmatpush2.msra.mxu0 0.0
    %202 = vmatprep.subr.mxu0 0.0
    %203 = vmatpush2.msra.mxu0 0.0
    %204 = vmatprep.subr.mxu0 0.0
    %205 = vmatpush2.msra.mxu0 0.0
    %206 = vmatprep.mubr.f32.mxu0 0.0
    %207 = vmatmul.mubr.f32.gmra.mxu0 %v56
    %v208 = vpop.f32.mrf.mxu0
    %v209 = vadd.f32 0.0, %v208
    %v210 = vpop.f32.mrf.mxu0
    %v211 = vadd.f32 0.0, %v210
    %212 = vdwg.mxu0
    %v213 = vmax.f32 %v138, 0.0
    %v214 = vmax.f32 %v140, 0.0
    %v215 = vmax.f32 %v209, 0.0
    %v216 = vmax.f32 %v211, 0.0
    %v217 = vld [vmem:[%s2] sm:$0xf]
    %s218 = sld [smem:[#allocation2]]
    %v219 = vstv %s218
    %v221 = vlaneseq
    %v222 = vshrl.u32 %v221, 7
    %v223 = vsub.s32 0, %v222
    %v224 = vrot.slane %v217, %v223
    %v225 = vlaneseq
    %v226 = vshrl.u32 %v225, 7
    %v227 = vsub.s32 1, %v226
    %v228 = vrot.slane %v217, %v227
    %v229 = vlaneseq
    %v230 = vshrl.u32 %v229, 7
    %v231 = vsub.s32 2, %v230
    %v232 = vrot.slane %v217, %v231
    %v233 = vlaneseq
    %v234 = vshrl.u32 %v233, 7
    %v235 = vsub.s32 3, %v234
    %v236 = vrot.slane %v217, %v235
    %241 = vmatprep.subr.mxu0 0.0
    %242 = vmatpush1.xpose.msra.mxu0 0.0
    %243 = vmatprep.subr.mxu0 0.0
    %244 = vmatpush1.xpose.msra.mxu0 0.0
    %245 = vmatprep.subr.mxu0 0.0
    %246 = vmatpush1.xpose.msra.mxu0 0.0
    %247 = vmatprep.subr.mxu0 0.0
    %248 = vmatpush1.xpose.msra.mxu0 0.0
    %249 = vmatprep.subr.mxu0 0.0
    %250 = vmatpush1.xpose.msra.mxu0 0.0
    %251 = vmatprep.subr.mxu0 0.0
    %252 = vmatpush1.xpose.msra.mxu0 0.0
    %253 = vmatprep.subr.mxu0 0.0
    %254 = vmatpush1.xpose.msra.mxu0 0.0
    %255 = vmatprep.subr.mxu0 0.0
    %256 = vmatpush1.xpose.msra.mxu0 0.0
    %257 = vmatprep.subr.mxu0 0.0
    %258 = vmatpush1.xpose.msra.mxu0 0.0
    %259 = vmatprep.subr.mxu0 0.0
    %260 = vmatpush1.xpose.msra.mxu0 0.0
    %261 = vmatprep.subr.mxu0 0.0
    %262 = vmatpush1.xpose.msra.mxu0 0.0
    %263 = vmatprep.subr.mxu0 0.0
    %264 = vmatpush1.xpose.msra.mxu0 0.0
    %265 = vmatprep.subr.mxu0 0.0
    %266 = vmatpush1.xpose.msra.mxu0 0.0
    %267 = vmatprep.subr.mxu0 0.0
    %268 = vmatpush1.xpose.msra.mxu0 0.0
    %269 = vmatprep.subr.mxu0 0.0
    %270 = vmatpush1.xpose.msra.mxu0 0.0
    %271 = vmatprep.subr.mxu0 %v214
    %272 = vmatpush1.xpose.msra.mxu0 %v213
    %273 = vmatprep.subr.mxu0 0.0
    %274 = vmatpush2.xpose.msra.mxu0 0.0
    %275 = vmatprep.subr.mxu0 0.0
    %276 = vmatpush2.xpose.msra.mxu0 0.0
    %277 = vmatprep.subr.mxu0 0.0
    %278 = vmatpush2.xpose.msra.mxu0 0.0
    %279 = vmatprep.subr.mxu0 0.0
    %280 = vmatpush2.xpose.msra.mxu0 0.0
    %281 = vmatprep.subr.mxu0 0.0
    %282 = vmatpush2.xpose.msra.mxu0 0.0
    %283 = vmatprep.subr.mxu0 0.0
    %284 = vmatpush2.xpose.msra.mxu0 0.0
    %285 = vmatprep.subr.mxu0 0.0
    %286 = vmatpush2.xpose.msra.mxu0 0.0
    %287 = vmatprep.subr.mxu0 0.0
    %288 = vmatpush2.xpose.msra.mxu0 0.0
    %289 = vmatprep.subr.mxu0 0.0
    %290 = vmatpush2.xpose.msra.mxu0 0.0
    %291 = vmatprep.subr.mxu0 0.0
    %292 = vmatpush2.xpose.msra.mxu0 0.0
    %293 = vmatprep.subr.mxu0 0.0
    %294 = vmatpush2.xpose.msra.mxu0 0.0
    %295 = vmatprep.subr.mxu0 0.0
    %296 = vmatpush2.xpose.msra.mxu0 0.0
    %297 = vmatprep.subr.mxu0 0.0
    %298 = vmatpush2.xpose.msra.mxu0 0.0
    %299 = vmatprep.subr.mxu0 0.0
    %300 = vmatpush2.xpose.msra.mxu0 0.0
    %301 = vmatprep.subr.mxu0 0.0
    %302 = vmatpush2.xpose.msra.mxu0 0.0
    %303 = vmatprep.subr.mxu0 0.0
    %304 = vmatpush2.xpose.msra.mxu0 0.0
    %305 = vmatprep.mubr.f32.mxu0 %v228
    %306 = vmatmul.mubr.f32.gmra.mxu0 %v224
    %v307 = vpop.f32.mrf.mxu0
    %v308 = vadd.f32 %v219, %v307
    %v309 = vpop.f32.mrf.mxu0
    %310 = vdwg.mxu0
    %311 = vmatprep.subr.mxu0 0.0
    %312 = vmatpush1.xpose.msra.mxu0 0.0
    %313 = vmatprep.subr.mxu0 0.0
    %314 = vmatpush1.xpose.msra.mxu0 0.0
    %315 = vmatprep.subr.mxu0 0.0
    %316 = vmatpush1.xpose.msra.mxu0 0.0
    %317 = vmatprep.subr.mxu0 0.0
    %318 = vmatpush1.xpose.msra.mxu0 0.0
    %319 = vmatprep.subr.mxu0 0.0
    %320 = vmatpush1.xpose.msra.mxu0 0.0
    %321 = vmatprep.subr.mxu0 0.0
    %322 = vmatpush1.xpose.msra.mxu0 0.0
    %323 = vmatprep.subr.mxu0 0.0
    %324 = vmatpush1.xpose.msra.mxu0 0.0
    %325 = vmatprep.subr.mxu0 0.0
    %326 = vmatpush1.xpose.msra.mxu0 0.0
    %327 = vmatprep.subr.mxu0 0.0
    %328 = vmatpush1.xpose.msra.mxu0 0.0
    %329 = vmatprep.subr.mxu0 0.0
    %330 = vmatpush1.xpose.msra.mxu0 0.0
    %331 = vmatprep.subr.mxu0 0.0
    %332 = vmatpush1.xpose.msra.mxu0 0.0
    %333 = vmatprep.subr.mxu0 0.0
    %334 = vmatpush1.xpose.msra.mxu0 0.0
    %335 = vmatprep.subr.mxu0 0.0
    %336 = vmatpush1.xpose.msra.mxu0 0.0
    %337 = vmatprep.subr.mxu0 0.0
    %338 = vmatpush1.xpose.msra.mxu0 0.0
    %339 = vmatprep.subr.mxu0 0.0
    %340 = vmatpush1.xpose.msra.mxu0 0.0
    %341 = vmatprep.subr.mxu0 %v216
    %342 = vmatpush1.xpose.msra.mxu0 %v215
    %343 = vmatprep.subr.mxu0 0.0
    %344 = vmatpush2.xpose.msra.mxu0 0.0
    %345 = vmatprep.subr.mxu0 0.0
    %346 = vmatpush2.xpose.msra.mxu0 0.0
    %347 = vmatprep.subr.mxu0 0.0
    %348 = vmatpush2.xpose.msra.mxu0 0.0
    %349 = vmatprep.subr.mxu0 0.0
    %350 = vmatpush2.xpose.msra.mxu0 0.0
    %351 = vmatprep.subr.mxu0 0.0
    %352 = vmatpush2.xpose.msra.mxu0 0.0
    %353 = vmatprep.subr.mxu0 0.0
    %354 = vmatpush2.xpose.msra.mxu0 0.0
    %355 = vmatprep.subr.mxu0 0.0
    %356 = vmatpush2.xpose.msra.mxu0 0.0
    %357 = vmatprep.subr.mxu0 0.0
    %358 = vmatpush2.xpose.msra.mxu0 0.0
    %359 = vmatprep.subr.mxu0 0.0
    %360 = vmatpush2.xpose.msra.mxu0 0.0
    %361 = vmatprep.subr.mxu0 0.0
    %362 = vmatpush2.xpose.msra.mxu0 0.0
    %363 = vmatprep.subr.mxu0 0.0
    %364 = vmatpush2.xpose.msra.mxu0 0.0
    %365 = vmatprep.subr.mxu0 0.0
    %366 = vmatpush2.xpose.msra.mxu0 0.0
    %367 = vmatprep.subr.mxu0 0.0
    %368 = vmatpush2.xpose.msra.mxu0 0.0
    %369 = vmatprep.subr.mxu0 0.0
    %370 = vmatpush2.xpose.msra.mxu0 0.0
    %371 = vmatprep.subr.mxu0 0.0
    %372 = vmatpush2.xpose.msra.mxu0 0.0
    %373 = vmatprep.subr.mxu0 0.0
    %374 = vmatpush2.xpose.msra.mxu0 0.0
    %375 = vmatprep.mubr.f32.mxu0 %v236
    %376 = vmatmul.mubr.f32.gmra.mxu0 %v232
    %v377 = vpop.f32.mrf.mxu0
    %v378 = vadd.f32 %v308, %v377
    %v379 = vpop.f32.mrf.mxu0
    %380 = vdwg.mxu0
    %vm381 = vcmask 57344
    %382 = vst.msk [vmem:[#allocation8] sm:$0x1] %vm381, %v378
    // Predicated region
    $region26: #{tpu_custom_call.1} parent=1 // pred_check
      _
    $region27: #{tpu_custom_call.1} parent=1 // pred_check_branch
      %384 = sbr.rel (0) target = $region29
    $region28: #{tpu_custom_call.1} parent=1 // pred_region
      %s386 = ssub.s32 16, 16
      %387 = vsyncadd [#allocation5], %s386
      %s389 = sshll.u32 [#allocation8], 4
      %s390 = int_to_ptr.vmem [resolvable:$true] %s389
      %392 = dma.vmem_to_hbm [thread:$0]  %s390, 16, %s4, [#allocation5]
    $region29: #{tpu_custom_call.1} parent=1 // pred_fallthru
      _
    // Predicated region
    $region30: #{tpu_custom_call.1} parent=1 // pred_check
      _
    $region31: #{tpu_custom_call.1} parent=1 // pred_check_branch
      %394 = sbr.rel (0) target = $region33
    $region32: #{tpu_custom_call.1} parent=1 // pred_region
      %395 = dma.done [#allocation5], 16
    $region33: #{tpu_custom_call.1} parent=1 // pred_fallthru
      _
    %396 = vsyncpa [#allocation4], 1
    %397 = vsyncpa [#allocation7], 1
    %398 = vsyncpa [#allocation5], 1

</llo_original>
